<compile_context>
chip_gen: v7x
topology: tpu7x:2x2x1
jax: 0.10.0
libtpu: 0.0.40
codegen_flags: <defaults>
</compile_context>

<pallas_src>
import functools

import jax
import jax.numpy as jnp
from jax.experimental import pallas as pl
from jax.experimental.pallas import tpu as pltpu

EPS = 1e-5


def _round_up(n, k):
    return ((n + k - 1) // k) * k


def _prenorm_residual_kernel(x_ref, m_ref, g_ref, b_ref, w_ref, wb_ref, o_ref,
                             *, d_model):
    # x_ref: (TM, D) in-dtype   m_ref: (TM, 1) f32   g/b/wb: (1, D) f32
    # w_ref: (D, D) bf16        o_ref: (TM, D)
    x = x_ref[...].astype(jnp.float32)
    m = m_ref[...].astype(jnp.float32)
    inv_d = jnp.float32(1.0 / d_model)

    # One-pass LayerNorm statistics (biased variance, like torch):
    #   mean = E[x], var = E[x^2] - mean^2   (f32; fine for LN-scale activations)
    s1 = jnp.sum(x, axis=-1, keepdims=True)
    s2 = jnp.sum(x * x, axis=-1, keepdims=True)
    mean = s1 * inv_d
    var = jnp.maximum(s2 * inv_d - mean * mean, 0.0)
    h = (x - mean) * jax.lax.rsqrt(var + EPS)
    h = h * g_ref[...] + b_ref[...]

    # mask before the block
    h = h * m

    # block: Linear(d_model, d_model) on the MXU — bf16 operands, f32 accumulate
    y = jnp.dot(h.astype(jnp.bfloat16), w_ref[...],
                preferred_element_type=jnp.float32) + wb_ref[...]

    # residual add (dropout = identity in eval), then final mask
    o_ref[...] = ((x + y) * m).astype(o_ref.dtype)


def pack_params(gamma, beta, w, wb):
    """One-time packing/casting of grid-constant operands (hoist out of the hot
    path; reuse the result across calls)."""
    return (gamma.reshape(1, -1).astype(jnp.float32),
            beta.reshape(1, -1).astype(jnp.float32),
            w.astype(jnp.bfloat16),               # (D_in, D_out), pre-transposed
            wb.reshape(1, -1).astype(jnp.float32))


def _vmem_estimate(tm, d):
    dp = _round_up(d, 128)
    xb = tm * dp * 4
    est = 2 * 2 * xb            # x (in) + out, double-buffered, f32
    est += 2 * tm * 128 * 4     # (tm, 1) mask tile pads to 128 lanes
    est += dp * dp * 2          # resident bf16 weight, single buffer
    est += 3 * 8 * dp * 4       # gamma / beta / bias (sublane padded)
    est += 4 * xb               # in-kernel full-tile temporaries (h, y, ...)
    return est


def _pick_tile(rows, d):
    # Target ~1 MiB of f32 rows per block, clamped to [256, 2048].
    tm = (1 << 20) // max(d * 4, 1)
    tm = max(256, min(tm, 2048))
    # Shrink until the footprint (incl. temporaries) sits well under v7x VMEM.
    while tm > 64 and _vmem_estimate(tm, d) > (40 << 20):
        tm = max(64, ((tm // 2) // 8) * 8)
    if tm >= rows:
        tm = rows                       # full-extent block (always legal)
    else:
        tm = max(8, (tm // 8) * 8)      # (8, 128) sublane constraint
    # Keep >= 2 grid steps so the "parallel" axis shards across v7x's 2 TCs.
    if pl.cdiv(rows, tm) < 2 and rows >= 16:
        tm = max(8, (((rows + 1) // 2) // 8) * 8)
    return tm


def prenorm_residual(x, m, params):
    """x: (B, T, D); m: (B, T, 1); params: output of pack_params()."""
    g2, b2, w2, wb2 = params
    B, T, D = x.shape
    rows = B * T

    xr = x.reshape(rows, D)                       # view-like reshape, no pad
    mr = m.reshape(rows, 1).astype(jnp.float32)

    tm = _pick_tile(rows, D)
    grid = (pl.cdiv(rows, tm),)                   # partial last tile is masked

    vmem_limit = int(min(max(1.25 * _vmem_estimate(tm, D), 16 << 20), 48 << 20))

    kernel = functools.partial(_prenorm_residual_kernel, d_model=D)
    const_idx = lambda i: (0, 0)                  # grid-invariant operands

    out = pl.pallas_call(
        kernel,
        out_shape=jax.ShapeDtypeStruct((rows, D), x.dtype),
        grid_spec=pltpu.PrefetchScalarGridSpec(
            num_scalar_prefetch=0,
            grid=grid,
            in_specs=[
                pl.BlockSpec((tm, D), lambda i: (i, 0)),    # x rows
                pl.BlockSpec((tm, 1), lambda i: (i, 0)),    # mask rows
                pl.BlockSpec((1, D), const_idx,
                             pipeline_mode=pl.Buffered(1)),  # gamma
                pl.BlockSpec((1, D), const_idx,
                             pipeline_mode=pl.Buffered(1)),  # beta
                pl.BlockSpec((D, D), const_idx,
                             pipeline_mode=pl.Buffered(1)),  # W (D_in, D_out)
                pl.BlockSpec((1, D), const_idx,
                             pipeline_mode=pl.Buffered(1)),  # W bias
            ],
            out_specs=pl.BlockSpec((tm, D), lambda i: (i, 0)),
        ),
        compiler_params=pltpu.CompilerParams(
            dimension_semantics=("parallel",),
            vmem_limit_bytes=vmem_limit,
        ),
    )(xr, mr, g2, b2, w2, wb2)

    return out.reshape(B, T, D)


def reference_f32(x, m, gamma, beta, w, wb):
    mean = jnp.mean(x, axis=-1, keepdims=True)
    var = jnp.mean((x - mean) ** 2, axis=-1, keepdims=True)
    h = (x - mean) / jnp.sqrt(var + EPS)
    h = h * gamma + beta
    h = h * m
    y = h @ w + wb
    return (x + y) * m


def reference_bf16_matmul(x, m, gamma, beta, w, wb):
    mean = jnp.mean(x, axis=-1, keepdims=True)
    var = jnp.mean((x - mean) ** 2, axis=-1, keepdims=True)
    h = (x - mean) / jnp.sqrt(var + EPS)
    h = h * gamma + beta
    h = h * m
    y = jnp.dot(h.astype(jnp.bfloat16), w.astype(jnp.bfloat16),
                preferred_element_type=jnp.float32) + wb
    return (x + y) * m


if __name__ == "__main__":
    B, T, D = 2, 8, 32
    key = jax.random.PRNGKey(0)
    kx, km, kw, kwb, kg, kb = jax.random.split(key, 6)

    x = jax.random.normal(kx, (B, T, D), dtype=jnp.float32)
    # mask (b, t, 1): 1 is valuable, 0 is padding
    m = (jax.random.uniform(km, (B, T, 1)) > 0.25).astype(jnp.float32)

    # LayerNorm params (torch init gamma=1, beta=0; perturbed deterministically)
    gamma = jnp.ones((D,), jnp.float32) + 0.01 * jax.random.normal(kg, (D,), jnp.float32)
    beta = 0.01 * jax.random.normal(kb, (D,), jnp.float32)

    # block = Linear(D, D); weight stored pre-transposed as (D_in, D_out)
    w = jax.random.normal(kw, (D, D), dtype=jnp.float32) * (1.0 / jnp.sqrt(D))
    wb = 0.01 * jax.random.normal(kwb, (D,), jnp.float32)

    # One-time packing of grid-constant operands (hoisted out of the hot path).
    params = pack_params(gamma, beta, w, wb)

    out = prenorm_residual(x, m, params)
    jax.block_until_ready(out)

    # Tight check vs a reference that uses the same bf16 matmul operands.
    ref_b = reference_bf16_matmul(x, m, gamma, beta, w, wb)
    assert jnp.allclose(out, ref_b, atol=5e-3, rtol=5e-3), (
        f"bf16-ref max err {jnp.max(jnp.abs(out - ref_b))}"
    )
    # Looser check vs the pure-f32 math (bf16 matmul rounding).
    ref_f = reference_f32(x, m, gamma, beta, w, wb)
    assert jnp.allclose(out, ref_f, atol=5e-2, rtol=5e-2), (
        f"f32-ref max err {jnp.max(jnp.abs(out - ref_f))}"
    )

    print("KERNEL_OK")
</pallas_src>

<mosaic_0001>
module attributes {stable_mosaic.version = 11 : i64} {
  func.func @_prenorm_residual_kernel(%arg0: i32, %arg1: memref<8x32xf32, #tpu.memory_space<vmem>>, %arg2: memref<8x1xf32, #tpu.memory_space<vmem>>, %arg3: memref<1x32xf32, #tpu.memory_space<vmem>>, %arg4: memref<1x32xf32, #tpu.memory_space<vmem>>, %arg5: memref<32x32xbf16, #tpu.memory_space<vmem>>, %arg6: memref<1x32xf32, #tpu.memory_space<vmem>>, %arg7: memref<8x32xf32, #tpu.memory_space<vmem>>) attributes {dimension_semantics = [#tpu.dimension_semantics<parallel>], iteration_bounds = array<i64: 2>, scalar_prefetch = 0 : i64, scratch_operands = 0 : i64, tpu.core_type = #tpu.core_type<tc>, window_params = [{transform_indices = @transform_0, window_bounds = array<i64: 8, 32>}, {transform_indices = @transform_1, window_bounds = array<i64: 8, 1>}, {pipeline_mode = #tpu.pipeline_mode<synchronous>, transform_indices = @transform_2, window_bounds = array<i64: 1, 32>}, {pipeline_mode = #tpu.pipeline_mode<synchronous>, transform_indices = @transform_3, window_bounds = array<i64: 1, 32>}, {pipeline_mode = #tpu.pipeline_mode<synchronous>, transform_indices = @transform_4, window_bounds = array<i64: 32, 32>}, {pipeline_mode = #tpu.pipeline_mode<synchronous>, transform_indices = @transform_5, window_bounds = array<i64: 1, 32>}, {transform_indices = @transform_6, window_bounds = array<i64: 8, 32>}]} {
    %c0 = arith.constant 0 : index
    %c0_0 = arith.constant 0 : index
    %0 = vector.load %arg1[%c0, %c0_0] : memref<8x32xf32, #tpu.memory_space<vmem>>, vector<8x32xf32>
    %c0_1 = arith.constant 0 : index
    %c0_2 = arith.constant 0 : index
    %1 = vector.load %arg2[%c0_1, %c0_2] : memref<8x1xf32, #tpu.memory_space<vmem>>, vector<8x1xf32>
    %cst = arith.constant dense<0.000000e+00> : vector<8xf32>
    %2 = vector.multi_reduction <add>, %0, %cst [1] : vector<8x32xf32> to vector<8xf32>
    %3 = vector.shape_cast %2 : vector<8xf32> to vector<8x1xf32>
    %4 = arith.mulf %0, %0 : vector<8x32xf32>
    %cst_3 = arith.constant dense<0.000000e+00> : vector<8xf32>
    %5 = vector.multi_reduction <add>, %4, %cst_3 [1] : vector<8x32xf32> to vector<8xf32>
    %6 = vector.shape_cast %5 : vector<8xf32> to vector<8x1xf32>
    %cst_4 = arith.constant 3.125000e-02 : f32
    %7 = vector.broadcast %cst_4 : f32 to vector<8x1xf32>
    %8 = arith.mulf %3, %7 : vector<8x1xf32>
    %cst_5 = arith.constant 3.125000e-02 : f32
    %9 = vector.broadcast %cst_5 : f32 to vector<8x1xf32>
    %10 = arith.mulf %6, %9 : vector<8x1xf32>
    %11 = arith.mulf %8, %8 : vector<8x1xf32>
    %12 = arith.subf %10, %11 : vector<8x1xf32>
    %cst_6 = arith.constant 0.000000e+00 : f32
    %13 = vector.broadcast %cst_6 : f32 to vector<8x1xf32>
    %14 = arith.maximumf %12, %13 : vector<8x1xf32>
    %15 = vector.broadcast %8 : vector<8x1xf32> to vector<8x32xf32>
    %16 = arith.subf %0, %15 : vector<8x32xf32>
    %cst_7 = arith.constant 9.99999974E-6 : f32
    %17 = vector.broadcast %cst_7 : f32 to vector<8x1xf32>
    %18 = arith.addf %14, %17 : vector<8x1xf32>
    %19 = math.rsqrt %18 : vector<8x1xf32>
    %20 = vector.broadcast %19 : vector<8x1xf32> to vector<8x32xf32>
    %21 = arith.mulf %16, %20 : vector<8x32xf32>
    %c0_8 = arith.constant 0 : index
    %c0_9 = arith.constant 0 : index
    %22 = vector.load %arg3[%c0_8, %c0_9] : memref<1x32xf32, #tpu.memory_space<vmem>>, vector<1x32xf32>
    %23 = vector.broadcast %22 : vector<1x32xf32> to vector<8x32xf32>
    %24 = arith.mulf %21, %23 : vector<8x32xf32>
    %c0_10 = arith.constant 0 : index
    %c0_11 = arith.constant 0 : index
    %25 = vector.load %arg4[%c0_10, %c0_11] : memref<1x32xf32, #tpu.memory_space<vmem>>, vector<1x32xf32>
    %26 = vector.broadcast %25 : vector<1x32xf32> to vector<8x32xf32>
    %27 = arith.addf %24, %26 : vector<8x32xf32>
    %28 = vector.broadcast %1 : vector<8x1xf32> to vector<8x32xf32>
    %29 = arith.mulf %27, %28 : vector<8x32xf32>
    %30 = arith.truncf %29 : vector<8x32xf32> to vector<8x32xbf16>
    %c0_12 = arith.constant 0 : index
    %c0_13 = arith.constant 0 : index
    %31 = vector.load %arg5[%c0_12, %c0_13] : memref<32x32xbf16, #tpu.memory_space<vmem>>, vector<32x32xbf16>
    %cst_14 = arith.constant dense<0.000000e+00> : vector<8x32xf32>
    %32 = tpu.matmul %30, %31, %cst_14 {dimension_numbers = #tpu.dot_dimension_numbers<[1], [0], [0], [1], [0, 0, 1, 1], [], []>} : vector<8x32xbf16>, vector<32x32xbf16>, vector<8x32xf32> -> vector<8x32xf32>
    %c0_15 = arith.constant 0 : index
    %c0_16 = arith.constant 0 : index
    %33 = vector.load %arg6[%c0_15, %c0_16] : memref<1x32xf32, #tpu.memory_space<vmem>>, vector<1x32xf32>
    %34 = vector.broadcast %33 : vector<1x32xf32> to vector<8x32xf32>
    %35 = arith.addf %32, %34 : vector<8x32xf32>
    %36 = arith.addf %0, %35 : vector<8x32xf32>
    %37 = vector.broadcast %1 : vector<8x1xf32> to vector<8x32xf32>
    %38 = arith.mulf %36, %37 : vector<8x32xf32>
    %c0_17 = arith.constant 0 : index
    %c0_18 = arith.constant 0 : index
    %39 = vector.load %arg7[%c0_17, %c0_18] : memref<8x32xf32, #tpu.memory_space<vmem>>, vector<8x32xf32>
    tpu.vector_store %arg7[%c0_17, %c0_18], %38 {strides = array<i32>} : memref<8x32xf32, #tpu.memory_space<vmem>>, vector<8x32xf32>,
    return
  }
  func.func @transform_0(%arg0: i32) -> (i32, i32) {
    %c0_i32 = arith.constant 0 : i32
    %c0_i32_0 = arith.constant 0 : i32
    return %arg0, %c0_i32 : i32, i32
  }
  func.func @transform_1(%arg0: i32) -> (i32, i32) {
    %c0_i32 = arith.constant 0 : i32
    %c0_i32_0 = arith.constant 0 : i32
    return %arg0, %c0_i32 : i32, i32
  }
  func.func @transform_2(%arg0: i32) -> (i32, i32) {
    %c0_i32 = arith.constant 0 : i32
    %c0_i32_0 = arith.constant 0 : i32
    %c0_i32_1 = arith.constant 0 : i32
    return %c0_i32, %c0_i32_0 : i32, i32
  }
  func.func @transform_3(%arg0: i32) -> (i32, i32) {
    %c0_i32 = arith.constant 0 : i32
    %c0_i32_0 = arith.constant 0 : i32
    %c0_i32_1 = arith.constant 0 : i32
    return %c0_i32, %c0_i32_0 : i32, i32
  }
  func.func @transform_4(%arg0: i32) -> (i32, i32) {
    %c0_i32 = arith.constant 0 : i32
    %c0_i32_0 = arith.constant 0 : i32
    %c0_i32_1 = arith.constant 0 : i32
    return %c0_i32, %c0_i32_0 : i32, i32
  }
  func.func @transform_5(%arg0: i32) -> (i32, i32) {
    %c0_i32 = arith.constant 0 : i32
    %c0_i32_0 = arith.constant 0 : i32
    %c0_i32_1 = arith.constant 0 : i32
    return %c0_i32, %c0_i32_0 : i32, i32
  }
  func.func @transform_6(%arg0: i32) -> (i32, i32) {
    %c0_i32 = arith.constant 0 : i32
    %c0_i32_0 = arith.constant 0 : i32
    return %arg0, %c0_i32 : i32, i32
  }
}

</mosaic_0001>

<llo_original>
// kernel: tpu_custom_call.1
$region0: #{tpu_custom_call.1}
  #allocation0 [shape = 'u32[]', space=smem, size = 0x4, offset = 0x4, fixed_abs, tag = 'smem constant byte address 0x4 - core index']
  #allocation1 [shape = 'u32[144,128]{1,0:T(1,128)}', space=vmem, size = 0x12000, scoped, tag = 'internal scratch']
  %s0 = inlined_call_operand.vmem [shape: f32[16,32], index: 0, kind: input, shape index: {}]
  %s1 = inlined_call_operand.vmem [shape: f32[16,1], index: 1, kind: input, shape index: {}]
  %s2 = inlined_call_operand.hbm [shape: f32[1,32], index: 2, kind: input, shape index: {}]
  %s3 = inlined_call_operand.hbm [shape: f32[1,32], index: 3, kind: input, shape index: {}]
  %s4 = inlined_call_operand.vmem [shape: bf16[32,32], index: 4, kind: input, shape index: {}]
  %s5 = inlined_call_operand.vmem [shape: f32[1,32], index: 5, kind: input, shape index: {}]
  %s6 = inlined_call_operand.hbm [shape: f32[16,32], index: 6, kind: output, shape index: {}]
  %s7 = sld [smem:[#allocation0]]
  $region65: #{tpu_custom_call.1} parent=0
    _
  %s9 = ssub.s32 1, %s7
  %s10 = scalar_select 0, %s9, %s7
  $region1: #{tpu_custom_call.1} parent=0
    #allocation2 [shape = 'u8[512]{0}', space=vmem, size = 0x400, scoped, tag = 'input window, operand 2, single buffered']
    #allocation3 [shape = 's32[2]{0}', space=sflag, size = 0x8, scoped, tag = 'scoped memory for tpu_custom_call.1']
    #allocation4 [shape = 's32[2]{0}', space=sflag, size = 0x8, scoped, tag = 'scoped memory for tpu_custom_call.1']
    #allocation5 [shape = 'u8[512]{0}', space=vmem, size = 0x400, scoped, tag = 'input window, operand 3, single buffered']
    #allocation6 [shape = 's32[1]{0}', space=sflag, size = 0x4, scoped, tag = 'scoped memory for tpu_custom_call.1']
    #allocation7 [shape = 'u8[8192]{0}', space=vmem, size = 0x2000, scoped, tag = 'output window, operand 0']
    %11 = vsyncpa [#allocation3], 0
    %12 = vsyncpa [#allocation6], 0
    %13 = vsyncpa [#allocation4], 0
    %s14 = scalar_lea.sflag [#allocation4], 1
    %15 = vsyncpa %s14, 0
    loop: start=0, step=1, limit=4
    $region2: #{tpu_custom_call.1} parent=1 // loop_pre_header
      _
    $region3: #{tpu_custom_call.1} parent=1 // loop_header
      %s17 = sphi 0, %s21
      %p18 = scmp.ge.s32.totalorder %s17, 4
      %s27 = sphi 0, %s29
      %s30 = sphi 0, %s27
      %s31 = sphi 0, %s30
      %s47 = sphi 0, %s31
      %s53 = sphi 0, %s55
      %s56 = sphi 0, %s53
      %s57 = sphi 0, %s56
      %s73 = sphi 0, %s57
      %s77 = sphi 0, %s77
      %s79 = sphi 0, %s77
      %s80 = sphi 0, %s79
      %s94 = sphi 0, %s80
      %s98 = sphi 0, %s98
      %s100 = sphi 0, %s98
      %s101 = sphi 0, %s100
      %s115 = sphi 0, %s101
      %s119 = sphi 0, %s119
      %s121 = sphi 0, %s119
      %s122 = sphi 0, %s121
      %s136 = sphi 0, %s122
      %s140 = sphi 0, %s140
      %s142 = sphi 0, %s140
      %s143 = sphi 0, %s142
      %s157 = sphi 0, %s143
      %s163 = sphi 0, %s165
      %s166 = sphi 0, %s163
      %s167 = sphi 0, %s166
      %s183 = sphi 0, %s167
    $region4: #{tpu_custom_call.1} parent=1 // loop_header_branch
      %20 = sbr.rel (%p18) target = $region8
    $region5: #{tpu_custom_call.1} parent=1 // loop_body
      %s22 = ssub.s32 %s17, 1
      %s23 = ssub.s32 %s17, 2
      %s24 = sadd.s32 %s17, 1
      %s25 = ssub.s32 %s17, %s24
      %p26 = scmp.eq.s32.totalorder %s25, 0
      %s28 = sadd.s32 %s27, 1
      %s29 = scalar_select %p26, %s27, %s28
      %p32 = pneg %p26
      %p33 = scmp.eq.s32.totalorder %s17, 1
      %p34 = por %p32, %p33
      %p35 = scmp.ne.s32.totalorder %s27, %s30
      %p36 = scmp.eq.s32.totalorder %s17, 0
      %p37 = por %p35, %p36
      %p38 = scmp.ne.s32.totalorder %s27, %s30
      %p39 = scmp.eq.s32.totalorder %s22, 1
      %p40 = por %p38, %p39
      %p41 = scmp.ne.s32.totalorder %s30, %s31
      %p42 = scmp.eq.s32.totalorder %s22, 0
      %p43 = por %p41, %p42
      %p44 = scmp.ne.s32.totalorder %s30, %s31
      %p45 = scmp.eq.s32.totalorder %s23, 1
      %p46 = por %p44, %p45
      %p48 = scmp.ne.s32.totalorder %s31, %s47
      %p49 = scmp.eq.s32.totalorder %s23, 0
      %p50 = por %p48, %p49
      %s51 = ssub.s32 %s17, %s24
      %p52 = scmp.eq.s32.totalorder %s51, 0
      %s54 = sadd.s32 %s53, 1
      %s55 = scalar_select %p52, %s53, %s54
      %p58 = pneg %p52
      %p59 = scmp.eq.s32.totalorder %s17, 1
      %p60 = por %p58, %p59
      %p61 = scmp.ne.s32.totalorder %s53, %s56
      %p62 = scmp.eq.s32.totalorder %s17, 0
      %p63 = por %p61, %p62
      %p64 = scmp.ne.s32.totalorder %s53, %s56
      %p65 = scmp.eq.s32.totalorder %s22, 1
      %p66 = por %p64, %p65
      %p67 = scmp.ne.s32.totalorder %s56, %s57
      %p68 = scmp.eq.s32.totalorder %s22, 0
      %p69 = por %p67, %p68
      %p70 = scmp.ne.s32.totalorder %s56, %s57
      %p71 = scmp.eq.s32.totalorder %s23, 1
      %p72 = por %p70, %p71
      %p74 = scmp.ne.s32.totalorder %s57, %s73
      %p75 = scmp.eq.s32.totalorder %s23, 0
      %p76 = por %p74, %p75
      %s78 = sadd.s32 %s77, 1
      %p81 = scmp.eq.s32.totalorder %s17, 1
      %p82 = scmp.ne.s32.totalorder %s77, %s79
      %p83 = scmp.eq.s32.totalorder %s17, 0
      %p84 = por %p82, %p83
      %p85 = scmp.ne.s32.totalorder %s77, %s79
      %p86 = scmp.eq.s32.totalorder %s22, 1
      %p87 = por %p85, %p86
      %p88 = scmp.ne.s32.totalorder %s79, %s80
      %p89 = scmp.eq.s32.totalorder %s22, 0
      %p90 = por %p88, %p89
      %p91 = scmp.ne.s32.totalorder %s79, %s80
      %p92 = scmp.eq.s32.totalorder %s23, 1
      %p93 = por %p91, %p92
      %p95 = scmp.ne.s32.totalorder %s80, %s94
      %p96 = scmp.eq.s32.totalorder %s23, 0
      %p97 = por %p95, %p96
      %s99 = sadd.s32 %s98, 1
      %p102 = scmp.eq.s32.totalorder %s17, 1
      %p103 = scmp.ne.s32.totalorder %s98, %s100
      %p104 = scmp.eq.s32.totalorder %s17, 0
      %p105 = por %p103, %p104
      %p106 = scmp.ne.s32.totalorder %s98, %s100
      %p107 = scmp.eq.s32.totalorder %s22, 1
      %p108 = por %p106, %p107
      %p109 = scmp.ne.s32.totalorder %s100, %s101
      %p110 = scmp.eq.s32.totalorder %s22, 0
      %p111 = por %p109, %p110
      %p112 = scmp.ne.s32.totalorder %s100, %s101
      %p113 = scmp.eq.s32.totalorder %s23, 1
      %p114 = por %p112, %p113
      %p116 = scmp.ne.s32.totalorder %s101, %s115
      %p117 = scmp.eq.s32.totalorder %s23, 0
      %p118 = por %p116, %p117
      %s120 = sadd.s32 %s119, 1
      %p123 = scmp.eq.s32.totalorder %s17, 1
      %p124 = scmp.ne.s32.totalorder %s119, %s121
      %p125 = scmp.eq.s32.totalorder %s17, 0
      %p126 = por %p124, %p125
      %p127 = scmp.ne.s32.totalorder %s119, %s121
      %p128 = scmp.eq.s32.totalorder %s22, 1
      %p129 = por %p127, %p128
      %p130 = scmp.ne.s32.totalorder %s121, %s122
      %p131 = scmp.eq.s32.totalorder %s22, 0
      %p132 = por %p130, %p131
      %p133 = scmp.ne.s32.totalorder %s121, %s122
      %p134 = scmp.eq.s32.totalorder %s23, 1
      %p135 = por %p133, %p134
      %p137 = scmp.ne.s32.totalorder %s122, %s136
      %p138 = scmp.eq.s32.totalorder %s23, 0
      %p139 = por %p137, %p138
      %s141 = sadd.s32 %s140, 1
      %p144 = scmp.eq.s32.totalorder %s17, 1
      %p145 = scmp.ne.s32.totalorder %s140, %s142
      %p146 = scmp.eq.s32.totalorder %s17, 0
      %p147 = por %p145, %p146
      %p148 = scmp.ne.s32.totalorder %s140, %s142
      %p149 = scmp.eq.s32.totalorder %s22, 1
      %p150 = por %p148, %p149
      %p151 = scmp.ne.s32.totalorder %s142, %s143
      %p152 = scmp.eq.s32.totalorder %s22, 0
      %p153 = por %p151, %p152
      %p154 = scmp.ne.s32.totalorder %s142, %s143
      %p155 = scmp.eq.s32.totalorder %s23, 1
      %p156 = por %p154, %p155
      %p158 = scmp.ne.s32.totalorder %s143, %s157
      %p159 = scmp.eq.s32.totalorder %s23, 0
      %p160 = por %p158, %p159
      %s161 = ssub.s32 %s17, %s24
      %p162 = scmp.eq.s32.totalorder %s161, 0
      %s164 = sadd.s32 %s163, 1
      %s165 = scalar_select %p162, %s163, %s164
      %p168 = pneg %p162
      %p169 = scmp.eq.s32.totalorder %s17, 1
      %p170 = por %p168, %p169
      %p171 = scmp.ne.s32.totalorder %s163, %s166
      %p172 = scmp.eq.s32.totalorder %s17, 0
      %p173 = por %p171, %p172
      %p174 = scmp.ne.s32.totalorder %s163, %s166
      %p175 = scmp.eq.s32.totalorder %s22, 1
      %p176 = por %p174, %p175
      %p177 = scmp.ne.s32.totalorder %s166, %s167
      %p178 = scmp.eq.s32.totalorder %s22, 0
      %p179 = por %p177, %p178
      %p180 = scmp.ne.s32.totalorder %s166, %s167
      %p181 = scmp.eq.s32.totalorder %s23, 1
      %p182 = por %p180, %p181
      %p184 = scmp.ne.s32.totalorder %s167, %s183
      %p185 = scmp.eq.s32.totalorder %s23, 0
      %p186 = por %p184, %p185
      %p187 = scmp.le.s32.totalorder 1, %s17
      %p188 = scmp.lt.s32.totalorder %s17, 3
      %p189 = pnand %p187, %p188
      %p190 = pneg %p189
      // Predicated region
      $region9: #{tpu_custom_call.1} parent=5 // pred_check
        _
      $region10: #{tpu_custom_call.1} parent=5 // pred_check_branch
        %192 = sbr.rel (%p189) target = $region12
      $region11: #{tpu_custom_call.1} parent=5 // pred_region
        %s193 = ssub.s32 %s17, 1
        // Predicated region
        $region13: #{tpu_custom_call.1} parent=11 // pred_check
          %p194 = pneg %p90
        $region14: #{tpu_custom_call.1} parent=11 // pred_check_branch
          %196 = sbr.rel (%p194) target = $region16
        $region15: #{tpu_custom_call.1} parent=11 // pred_region
          %s198 = ssub.s32 16, 16
          %199 = vsyncadd [#allocation3], %s198
          %s201 = sshll.u32 [#allocation2], 4
          %s202 = int_to_ptr.vmem [resolvable:$true] %s201
          %204 = dma.hbm_to_vmem [thread:$0]  %s2, 16, %s202, [#allocation3]
        $region16: #{tpu_custom_call.1} parent=11 // pred_fallthru
          _
        // Predicated region
        $region17: #{tpu_custom_call.1} parent=11 // pred_check
          %p205 = pneg %p111
        $region18: #{tpu_custom_call.1} parent=11 // pred_check_branch
          %207 = sbr.rel (%p205) target = $region20
        $region19: #{tpu_custom_call.1} parent=11 // pred_region
          %s209 = ssub.s32 16, 16
          %210 = vsyncadd [#allocation6], %s209
          %s212 = sshll.u32 [#allocation5], 4
          %s213 = int_to_ptr.vmem [resolvable:$true] %s212
          %215 = dma.hbm_to_vmem [thread:$0]  %s3, 16, %s213, [#allocation6]
        $region20: #{tpu_custom_call.1} parent=11 // pred_fallthru
          _
        // Predicated region
        $region21: #{tpu_custom_call.1} parent=11 // pred_check
          %p216 = pneg %p132
        $region22: #{tpu_custom_call.1} parent=11 // pred_check_branch
          %218 = sbr.rel (%p216) target = $region24
        $region23: #{tpu_custom_call.1} parent=11 // pred_region
          _
        $region24: #{tpu_custom_call.1} parent=11 // pred_fallthru
          _
        // Predicated region
        $region25: #{tpu_custom_call.1} parent=11 // pred_check
          %p219 = pneg %p153
        $region26: #{tpu_custom_call.1} parent=11 // pred_check_branch
          %221 = sbr.rel (%p219) target = $region28
        $region27: #{tpu_custom_call.1} parent=11 // pred_region
          _
        $region28: #{tpu_custom_call.1} parent=11 // pred_fallthru
          _
      $region12: #{tpu_custom_call.1} parent=5 // pred_fallthru
        _
      %p222 = scmp.lt.s32.totalorder %s17, 2
      // Predicated region
      $region29: #{tpu_custom_call.1} parent=5 // pred_check
        %p223 = pneg %p222
      $region30: #{tpu_custom_call.1} parent=5 // pred_check_branch
        %225 = sbr.rel (%p223) target = $region32
      $region31: #{tpu_custom_call.1} parent=5 // pred_region
        // Predicated region
        $region33: #{tpu_custom_call.1} parent=31 // pred_check
          %p226 = pneg %p37
        $region34: #{tpu_custom_call.1} parent=31 // pred_check_branch
          %228 = sbr.rel (%p226) target = $region36
        $region35: #{tpu_custom_call.1} parent=31 // pred_region
          %p229 = scmp.lt.s32.totalorder %s17, 1
          %s230 = scalar_select %p229, %s17, 1
          %s231 = smul.addr %s230, 8
          %s232 = scalar_lea.vmem %s0, %s231
        $region36: #{tpu_custom_call.1} parent=31 // pred_fallthru
          _
        // Predicated region
        $region37: #{tpu_custom_call.1} parent=31 // pred_check
          %p233 = pneg %p63
        $region38: #{tpu_custom_call.1} parent=31 // pred_check_branch
          %235 = sbr.rel (%p233) target = $region40
        $region39: #{tpu_custom_call.1} parent=31 // pred_region
          %p236 = scmp.lt.s32.totalorder %s17, 1
          %s237 = scalar_select %p236, %s17, 1
          %s238 = smul.addr %s237, 8
          %s239 = scalar_lea.vmem %s1, %s238
        $region40: #{tpu_custom_call.1} parent=31 // pred_fallthru
          _
      $region32: #{tpu_custom_call.1} parent=5 // pred_fallthru
        _
      %p240 = scmp.le.s32.totalorder 1, %s17
      %p241 = scmp.lt.s32.totalorder %s17, 3
      %p242 = pnand %p240, %p241
      %p243 = pneg %p242
      // Predicated region
      $region41: #{tpu_custom_call.1} parent=5 // pred_check
        _
      $region42: #{tpu_custom_call.1} parent=5 // pred_check_branch
        %245 = sbr.rel (%p242) target = $region44
      $region43: #{tpu_custom_call.1} parent=5 // pred_region
        %s246 = ssub.s32 %s17, 1
        // Predicated region
        $region45: #{tpu_custom_call.1} parent=43 // pred_check
          %p247 = pneg %p90
        $region46: #{tpu_custom_call.1} parent=43 // pred_check_branch
          %249 = sbr.rel (%p247) target = $region48
        $region47: #{tpu_custom_call.1} parent=43 // pred_region
          %250 = dma.done [#allocation3], 16
        $region48: #{tpu_custom_call.1} parent=43 // pred_fallthru
          _
        // Predicated region
        $region49: #{tpu_custom_call.1} parent=43 // pred_check
          %p251 = pneg %p111
        $region50: #{tpu_custom_call.1} parent=43 // pred_check_branch
          %253 = sbr.rel (%p251) target = $region52
        $region51: #{tpu_custom_call.1} parent=43 // pred_region
          %254 = dma.done [#allocation6], 16
        $region52: #{tpu_custom_call.1} parent=43 // pred_fallthru
          _
        %p255 = scmp.lt.s32.totalorder %s22, 1
        %s256 = scalar_select %p255, %s22, 1
        %s257 = smul.addr %s256, 8
        %s258 = scalar_lea.vmem %s0, %s257
        %p259 = pneg %p43
        %p260 = pneg %p40
        %p261 = scmp.lt.s32.totalorder %s22, 1
        %s262 = scalar_select %p261, %s22, 1
        %s263 = smul.addr %s262, 8
        %s264 = scalar_lea.vmem %s1, %s263
        %p265 = pneg %p69
        %p266 = pneg %p66
        %p267 = pneg %p90
        %p268 = pneg %p87
        %p269 = pneg %p111
        %p270 = pneg %p108
        %p271 = pneg %p132
        %p272 = pneg %p129
        %p273 = pneg %p153
        %p274 = pneg %p150
        %p275 = pneg %p179
        %p276 = pneg %p176
        %s277 = sand.u32 %s166, 1
        %s278 = scalar_lea.sflag [#allocation4], %s277
        %s279 = sand.u32 %s166, 1
        %s280 = smul.addr %s279, 8
        %s281 = scalar_lea.vmem [#allocation7], %s280
        %p282 = scmp.lt.s32.totalorder %s22, 1
        %s283 = scalar_select %p282, %s22, 1
        %s284 = smul.addr %s283, 8
        %s285 = scalar_lea.vmem %s0, %s284
        %p286 = scmp.lt.s32.totalorder %s22, 1
        %s287 = scalar_select %p286, %s22, 1
        %s288 = smul.addr %s287, 8
        %s289 = scalar_lea.vmem %s1, %s288
        %v291 = vld [vmem:[%s285] sm:$0xff]
        %v292 = vld [vmem:[%s289] sm:$0xff]
        %vm293 = vcmask 261120
        %v294 = vsel %vm293, %v291, 0.0
        %295 = vadd.xlane.f32.xlu0 %v294
        %v296 = vpop.xlane.xlu0 %295
        %v297 = vmul.f32 %v291, %v291
        %v298 = vsel %vm293, %v297, 0.0
        %299 = vadd.xlane.f32.xlu0 %v298
        %v300 = vpop.xlane.xlu0 %299
        %v301 = vmul.f32 %v296, 0.03125
        %v302 = vmul.f32 %v300, 0.03125
        %v303 = vmul.f32 %v301, %v301
        %v304 = vsub.f32 %v302, %v303
        %v305 = vmax.f32 %v304, 0.0
        %v306 = vsub.f32 %v291, %v301
        %v307 = vadd.f32 %v305, 1e-05
        %v308 = vrsqrt.pop %v307
        %v309 = vmul.f32 %v306, %v308
        %v310 = vld [vmem:[#allocation2] sm:$0x1]
        %v312 = vlaneseq
        %v313 = vshrl.u32 %v312, 7
        %v314 = vsub.s32 0, %v313
        %v315 = vrot.slane %v310, %v314
        %v317 = vmul.f32 %v309, %v315
        %v318 = vld [vmem:[#allocation5] sm:$0x1]
        %v320 = vlaneseq
        %v321 = vshrl.u32 %v320, 7
        %v322 = vsub.s32 0, %v321
        %v323 = vrot.slane %v318, %v322
        %v325 = vadd.f32 %v317, %v323
        %327 = vset.pattern.permute.xlu0 0
        %328 = vperm.xlu0 %327, %v292
        %v329 = vpop.permute.xlu0 %328
        %v331 = vmul.f32 %v325, %v329
        %v332 = vpack.c.bf16 %v331, %v331
        %v333 = vld [vmem:[%s4] sm:$0xf]
        %v334 = vld [vmem:[%s4 + $0x4] sm:$0xf]
        %v335 = vld [vmem:[%s4 + $0x8] sm:$0xf]
        %v336 = vld [vmem:[%s4 + $0xc] sm:$0xf]
        %v337 = vld [vmem:[%s5] sm:$0x1]
        %v339 = vlaneseq
        %v340 = vshrl.u32 %v339, 7
        %v341 = vsub.s32 0, %v340
        %v342 = vrot.slane %v337, %v341
        %v348 = vunpack.c.l.b16 %v333
        %v349 = vunpack.c.l.b16 %v334
        %v350 = vunpack.c.l.b16 %v335
        %v351 = vunpack.c.l.b16 %v336
        %v352 = vpack.c.b16 %v349, %v348
        %v353 = vpack.c.b16 %v351, %v350
        %v357 = vsel %vm293, %v332, 0
        %359 = vmatprep.subr.bf16.mxu0 0
        %360 = vmatpush1.bf16.msra.mxu0 %v352
        %361 = vmatprep.subr.bf16.mxu0 0
        %362 = vmatpush1.bf16.msra.mxu0 %v353
        %363 = vmatprep.subr.bf16.mxu0 0
        %364 = vmatpush1.bf16.msra.mxu0 0
        %365 = vmatprep.subr.bf16.mxu0 0
        %366 = vmatpush1.bf16.msra.mxu0 0
        %367 = vmatprep.subr.bf16.mxu0 0
        %368 = vmatpush1.bf16.msra.mxu0 0
        %369 = vmatprep.subr.bf16.mxu0 0
        %370 = vmatpush1.bf16.msra.mxu0 0
        %371 = vmatprep.subr.bf16.mxu0 0
        %372 = vmatpush1.bf16.msra.mxu0 0
        %373 = vmatprep.subr.bf16.mxu0 0
        %374 = vmatpush1.bf16.msra.mxu0 0
        %375 = vmatprep.subr.bf16.mxu0 0
        %376 = vmatpush1.bf16.msra.mxu0 0
        %377 = vmatprep.subr.bf16.mxu0 0
        %378 = vmatpush1.bf16.msra.mxu0 0
        %379 = vmatprep.subr.bf16.mxu0 0
        %380 = vmatpush1.bf16.msra.mxu0 0
        %381 = vmatprep.subr.bf16.mxu0 0
        %382 = vmatpush1.bf16.msra.mxu0 0
        %383 = vmatprep.subr.bf16.mxu0 0
        %384 = vmatpush1.bf16.msra.mxu0 0
        %385 = vmatprep.subr.bf16.mxu0 0
        %386 = vmatpush1.bf16.msra.mxu0 0
        %387 = vmatprep.subr.bf16.mxu0 0
        %388 = vmatpush1.bf16.msra.mxu0 0
        %389 = vmatprep.subr.bf16.mxu0 0
        %390 = vmatpush1.bf16.msra.mxu0 0
        %391 = vmatprep.mubr.bf16.mxu0 0
        %392 = vmatmul.mubr.bf16.gmra.mrb[0].mxu0 %v357
        %v393 = vpop.f32.mrb[0].mxu0
        %v394 = vadd.f32 %v342, %v393
        %v395 = vpop.f32.mrb[0].mxu0
        %v396 = vpop.f32.mrb[0].mxu0
        %v397 = vpop.f32.mrb[0].mxu0
        %398 = vdwg.mxu0
        %v399 = vadd.f32 %v291, %v394
        %v400 = vmul.f32 %v399, %v329
        %401 = vst.msk [vmem:[%s281] sm:$0xff] %vm293, %v400
        %s402 = sand.u32 %s166, 1
        %s403 = scalar_lea.sflag [#allocation4], %s402
        %s404 = sand.u32 %s166, 1
        %s405 = smul.addr %s404, 8
        %s406 = scalar_lea.vmem [#allocation7], %s405
        // Predicated region
        $region53: #{tpu_custom_call.1} parent=43 // pred_check
          %p407 = pneg %p176
        $region54: #{tpu_custom_call.1} parent=43 // pred_check_branch
          %409 = sbr.rel (%p407) target = $region56
        $region55: #{tpu_custom_call.1} parent=43 // pred_region
          %s411 = ssub.s32 128, 128
          %412 = vsyncadd %s403, %s411
          %s413 = smul.addr %s22, 128
          %s414 = scalar_lea.hbm %s6, %s413
          %s416 = sshll.u32 %s406, 4
          %s417 = int_to_ptr.vmem [resolvable:$true] %s416
          %419 = dma.vmem_to_hbm [thread:$0]  %s417, 128, %s414, %s403
        $region56: #{tpu_custom_call.1} parent=43 // pred_fallthru
          _
      $region44: #{tpu_custom_call.1} parent=5 // pred_fallthru
        _
      %p420 = scmp.le.s32.totalorder 2, %s17
      // Predicated region
      $region57: #{tpu_custom_call.1} parent=5 // pred_check
        %p421 = pneg %p420
      $region58: #{tpu_custom_call.1} parent=5 // pred_check_branch
        %423 = sbr.rel (%p421) target = $region60
      $region59: #{tpu_custom_call.1} parent=5 // pred_region
        %s424 = ssub.s32 %s17, 2
        // Predicated region
        $region61: #{tpu_custom_call.1} parent=59 // pred_check
          %p425 = pneg %p182
        $region62: #{tpu_custom_call.1} parent=59 // pred_check_branch
          %427 = sbr.rel (%p425) target = $region64
        $region63: #{tpu_custom_call.1} parent=59 // pred_region
          %s428 = sand.u32 %s167, 1
          %s429 = scalar_lea.sflag [#allocation4], %s428
          %s430 = sand.u32 %s167, 1
          %s431 = smul.addr %s430, 8
          %s432 = scalar_lea.vmem [#allocation7], %s431
          %433 = dma.done %s429, 128
        $region64: #{tpu_custom_call.1} parent=59 // pred_fallthru
          _
      $region60: #{tpu_custom_call.1} parent=5 // pred_fallthru
        _
    $region6: #{tpu_custom_call.1} parent=1 // loop_footer
      %s21 = sadd.s32 1, %s17
    $region7: #{tpu_custom_call.1} parent=1 // loop_footer_branch
      %16 = sbr.rel target = $region3
    $region8: #{tpu_custom_call.1} parent=1 // loop_exit
      _
    %434 = vsyncpa [#allocation3], 1
    %s435 = scalar_lea.sflag [#allocation3], 1
    %436 = vsyncpa %s435, 1
    %437 = vsyncpa [#allocation6], 1
    %438 = vsyncpa [#allocation4], 1
    %s439 = scalar_lea.sflag [#allocation4], 1
    %440 = vsyncpa %s439, 1

</llo_original>
